<compile_context>
chip_gen: v7x
topology: tpu7x:2x2x1
jax: 0.10.0
libtpu: 0.0.40
codegen_flags: <defaults>
</compile_context>

<pallas_src>
import functools

import jax
import jax.numpy as jnp
from jax.experimental import pallas as pl
from jax.experimental.pallas import tpu as pltpu


def _round_up(v, m):
    return (v + m - 1) // m * m


# ----------------------------------------------------------------------------
# Fused matmul + BN-affine + (residual) + (ReLU) Pallas kernel
# ----------------------------------------------------------------------------
def _mm_kernel(*refs, relu, has_res):
    if has_res:
        x_ref, w_ref, s_ref, b_ref, r_ref, o_ref, acc_ref = refs
    else:
        x_ref, w_ref, s_ref, b_ref, o_ref, acc_ref = refs
    k = pl.program_id(2)

    @pl.when(k == 0)
    def _():
        acc_ref[...] = jnp.zeros_like(acc_ref)

    acc_ref[...] += jnp.dot(x_ref[...], w_ref[...],
                            preferred_element_type=jnp.float32)

    @pl.when(k == pl.num_programs(2) - 1)
    def _():
        y = acc_ref[...] * s_ref[...] + b_ref[...]
        if has_res:
            y = y + r_ref[...].astype(jnp.float32)
        if relu:
            y = jnp.maximum(y, 0.0)
        o_ref[...] = y.astype(o_ref.dtype)


def _choose_tiles(M, pK, pN):
    # rows: bf16 needs sublane multiples of 16; use fat tiles when M is large
    if M >= 256:
        tm = 256
    elif M >= 128:
        tm = 128
    else:
        tm = max(16, _round_up(M, 16))
    pM = _round_up(M, tm)
    gi = pM // tm
    # cols: wider tiles for weight-streaming (tiny-M) GEMMs, but keep at
    # least 2 steps on a parallel axis when possible (megacore).
    cands = (512, 256, 128) if M <= 64 else (256, 128)
    tn = 128
    for c in cands:
        if pN % c != 0:
            continue
        if gi == 1 and pN > 128 and pN // c < 2:
            continue
        tn = c
        break
    # K tile: largest multiple of 128 (<=1280) that divides pK exactly, so the
    # reduction dim is never over-padded (K=576 -> 640 one step, 1152 exact..).
    kq = pK // 128
    tk = 128
    for f in range(min(kq, 10), 0, -1):
        if kq % f == 0:
            tk = 128 * f
            break
    return pM, tm, tk, tn


@functools.lru_cache(maxsize=None)
def _build_matmul(pM, pK, pN, tm, tk, tn, relu, has_res, out_dtype_name):
    out_dtype = jnp.dtype(out_dtype_name)
    grid = (pM // tm, pN // tn, pK // tk)
    in_specs = [
        pl.BlockSpec((tm, tk), lambda i, j, k: (i, k)),
        pl.BlockSpec((tk, tn), lambda i, j, k: (k, j)),
        pl.BlockSpec((1, tn), lambda i, j, k: (0, j)),
        pl.BlockSpec((1, tn), lambda i, j, k: (0, j)),
    ]
    if has_res:
        in_specs.append(pl.BlockSpec((tm, tn), lambda i, j, k: (i, j)))
    return pl.pallas_call(
        functools.partial(_mm_kernel, relu=relu, has_res=has_res),
        out_shape=jax.ShapeDtypeStruct((pM, pN), out_dtype),
        grid_spec=pltpu.PrefetchScalarGridSpec(
            num_scalar_prefetch=0,
            grid=grid,
            in_specs=in_specs,
            out_specs=pl.BlockSpec((tm, tn), lambda i, j, k: (i, j)),
            scratch_shapes=[pltpu.VMEM((tm, tn), jnp.float32)]),
        compiler_params=pltpu.CompilerParams(
            dimension_semantics=("parallel", "parallel", "arbitrary"),
            vmem_limit_bytes=32 * 1024 * 1024),
    )


def fused_matmul(x, w_pad, scale_pad, bias_pad, n_out,
                 residual=None, relu=False, out_dtype=jnp.bfloat16):
    """x: (M, K); w_pad: (pK, pN) bf16 pre-padded; scale/bias: (1, pN) f32."""
    M, K = x.shape
    pK, pN = w_pad.shape
    pM, tm, tk, tn = _choose_tiles(M, pK, pN)

    x = x.astype(jnp.bfloat16)
    if pM != M or pK != K:
        x = jnp.pad(x, ((0, pM - M), (0, pK - K)))
    args = [x, w_pad, scale_pad, bias_pad]
    if residual is not None:
        r = residual.astype(jnp.bfloat16)
        if pM != M or pN != n_out:
            r = jnp.pad(r, ((0, pM - M), (0, pN - n_out)))
        args.append(r)

    fn = _build_matmul(pM, pK, pN, tm, tk, tn, bool(relu),
                       residual is not None, jnp.dtype(out_dtype).name)
    out = fn(*args)
    if pM != M or pN != n_out:
        out = out[:M, :n_out]
    return out


# ----------------------------------------------------------------------------
# Conv (im2col glue for k>1; plain reshape for 1x1) + fused Pallas matmul
# ----------------------------------------------------------------------------
def _im2col(x, KH, KW, stride, pad):
    N, H, W, C = x.shape
    OH = (H + 2 * pad - KH) // stride + 1
    OW = (W + 2 * pad - KW) // stride + 1
    xp = jnp.pad(x, ((0, 0), (pad, pad), (pad, pad), (0, 0))) if pad else x
    cols = []
    for kh in range(KH):
        for kw in range(KW):
            cols.append(xp[:, kh:kh + stride * (OH - 1) + 1:stride,
                            kw:kw + stride * (OW - 1) + 1:stride, :])
    patches = jnp.stack(cols, axis=3)                 # (N, OH, OW, KH*KW, C)
    return patches.reshape(N * OH * OW, KH * KW * C), OH, OW


def conv_bn_act(x, cp, relu, residual=None):
    # x: (N, H, W, C) bf16; cp: prepared conv dict
    N, H, W, C = x.shape
    KH, KW, s, p = cp['kh'], cp['kw'], cp['stride'], cp['pad']
    if KH == 1 and KW == 1:
        if s > 1:
            x = x[:, ::s, ::s, :]
        OH, OW = x.shape[1], x.shape[2]
        xmat = x.reshape(N * OH * OW, C)
    else:
        xmat, OH, OW = _im2col(x, KH, KW, s, p)
    rmat = (residual.reshape(N * OH * OW, cp['cout'])
            if residual is not None else None)
    y = fused_matmul(xmat, cp['w'], cp['scale'], cp['bias'], cp['cout'],
                     residual=rmat, relu=relu, out_dtype=jnp.bfloat16)
    return y.reshape(N, OH, OW, cp['cout'])


# ----------------------------------------------------------------------------
# MaxPool 3x3 / stride 2 / pad 1 — parity-split, 9-tap max taken in-kernel
# (avoids the 9x HBM im2col materialization; grid over the batch)
# ----------------------------------------------------------------------------
def _maxpool_kernel(p00_ref, p01_ref, p10_ref, p11_ref, o_ref):
    oh, ow = o_ref.shape[1], o_ref.shape[2]
    taps = ((p00_ref, (0, 1), (0, 1)),
            (p01_ref, (0, 1), (0,)),
            (p10_ref, (0,), (0, 1)),
            (p11_ref, (0,), (0,)))
    out = None
    for ref, dhs, dws in taps:
        for dh in dhs:
            for dw in dws:
                v = ref[0, dh:dh + oh, dw:dw + ow, :]
                out = v if out is None else jnp.maximum(out, v)
    o_ref[0] = out


def maxpool_3x3_s2_p1(x):
    N, H, W, C = x.shape
    OH = (H + 2 - 3) // 2 + 1
    OW = (W + 2 - 3) // 2 + 1
    xp = jnp.pad(x, ((0, 0), (1, 1), (1, 1), (0, 0)),
                 constant_values=-jnp.inf)
    parts = [xp[:, ph::2, pw::2, :] for ph in (0, 1) for pw in (0, 1)]
    HP, WP = parts[0].shape[1], parts[0].shape[2]
    return pl.pallas_call(
        _maxpool_kernel,
        out_shape=jax.ShapeDtypeStruct((N, OH, OW, C), x.dtype),
        grid=(N,),
        in_specs=[pl.BlockSpec((1, HP, WP, C), lambda n: (n, 0, 0, 0))
                  for _ in range(4)],
        out_specs=pl.BlockSpec((1, OH, OW, C), lambda n: (n, 0, 0, 0)),
        compiler_params=pltpu.CompilerParams(
            dimension_semantics=("parallel",)),
    )(*parts)


# ----------------------------------------------------------------------------
# Global (adaptive 1x1) average pool — Pallas mean reduction (f32 accumulate)
# ----------------------------------------------------------------------------
def _avgpool_kernel(x_ref, o_ref):
    o_ref[...] = jnp.mean(x_ref[...].astype(jnp.float32),
                          axis=1).astype(o_ref.dtype)


def global_avgpool(x):
    N, H, W, C = x.shape
    xr = x.reshape(N, H * W, C)
    return pl.pallas_call(
        _avgpool_kernel,
        out_shape=jax.ShapeDtypeStruct((N, C), jnp.bfloat16),
        grid=(1,),
        in_specs=[pl.BlockSpec((N, H * W, C), lambda i: (0, 0, 0))],
        out_specs=pl.BlockSpec((N, C), lambda i: (0, 0)),
    )(xr)


# ----------------------------------------------------------------------------
# ResNet-50 (Bottleneck) structure + custom FC head of Hybrid
# ----------------------------------------------------------------------------
def bottleneck_forward(x, bp):
    out = conv_bn_act(x, bp['conv1'], True)
    out = conv_bn_act(out, bp['conv2'], True)
    identity = conv_bn_act(x, bp['down'], False) if 'down' in bp else x
    # residual add + final ReLU fused into the last conv's Pallas kernel
    out = conv_bn_act(out, bp['conv3'], True, residual=identity)
    return out


def hybrid_forward(x_nchw, params):
    x = jnp.transpose(x_nchw, (0, 2, 3, 1)).astype(jnp.bfloat16)   # NCHW->NHWC
    out = conv_bn_act(x, params['stem'], True)
    out = maxpool_3x3_s2_p1(out)
    for name in ('layer1', 'layer2', 'layer3', 'layer4'):
        for bp in params[name]:
            out = bottleneck_forward(out, bp)
    pooled = global_avgpool(out)                    # (N, 2048) == avgpool+view
    fc1 = params['fc1']
    h = fused_matmul(pooled, fc1['w'], fc1['scale'], fc1['bias'], fc1['n_out'],
                     relu=True, out_dtype=jnp.bfloat16)
    # Dropout(0.5): inference semantics -> identity
    fc2 = params['fc2']
    logits = fused_matmul(h, fc2['w'], fc2['scale'], fc2['bias'], fc2['n_out'],
                          relu=False, out_dtype=jnp.float32)
    reg_loss = jnp.float32(0.0)                     # attention=False branch
    return logits, reg_loss


# ----------------------------------------------------------------------------
# One-time parameter preparation (hoisted weight/BN preprocessing)
# ----------------------------------------------------------------------------
def _prep_conv(w, bn, stride, pad):
    O, C, KH, KW = w.shape
    K = KH * KW * C
    pK, pN = _round_up(K, 128), _round_up(O, 128)
    wmat = jnp.transpose(w, (2, 3, 1, 0)).reshape(K, O)          # (kh,kw,c) x O
    wmat = jnp.pad(wmat, ((0, pK - K), (0, pN - O))).astype(jnp.bfloat16)
    eps = 1e-5
    scale = bn['gamma'] * jax.lax.rsqrt(bn['var'] + eps)         # BN (inference)
    bias = bn['beta'] - bn['mean'] * scale
    scale = jnp.pad(scale, (0, pN - O)).reshape(1, pN).astype(jnp.float32)
    bias = jnp.pad(bias, (0, pN - O)).reshape(1, pN).astype(jnp.float32)
    return {'w': wmat, 'scale': scale, 'bias': bias,
            'kh': KH, 'kw': KW, 'stride': stride, 'pad': pad, 'cout': O}


def _prep_fc(w, b):
    K, O = w.shape
    pK, pN = _round_up(K, 128), _round_up(O, 128)
    wp = jnp.pad(w, ((0, pK - K), (0, pN - O))).astype(jnp.bfloat16)
    scale = jnp.ones((1, pN), jnp.float32)
    bias = jnp.pad(b, (0, pN - O)).reshape(1, pN).astype(jnp.float32)
    return {'w': wp, 'scale': scale, 'bias': bias, 'n_out': O}


def prepare_params(raw):
    p = {'stem': _prep_conv(raw['conv1'], raw['bn1'], stride=2, pad=3)}
    for name in ('layer1', 'layer2', 'layer3', 'layer4'):
        blocks = []
        for b in raw[name]:
            s = b['stride']
            nb = {'conv1': _prep_conv(b['conv1'], b['bn1'], 1, 0),
                  'conv2': _prep_conv(b['conv2'], b['bn2'], s, 1),
                  'conv3': _prep_conv(b['conv3'], b['bn3'], 1, 0)}
            if 'down_conv' in b:
                nb['down'] = _prep_conv(b['down_conv'], b['down_bn'], s, 0)
            blocks.append(nb)
        p[name] = blocks
    p['fc1'] = _prep_fc(raw['fc1_w'], raw['fc1_b'])
    p['fc2'] = _prep_fc(raw['fc2_w'], raw['fc2_b'])
    return p


# ----------------------------------------------------------------------------
# Deterministic parameter initialization (shapes from the module __init__)
# ----------------------------------------------------------------------------
_key = jax.random.PRNGKey(0)
_cnt = [0]


def _next_key():
    _cnt[0] += 1
    return jax.random.fold_in(_key, _cnt[0])


def init_conv(o, i, kh, kw):
    std = (2.0 / (i * kh * kw)) ** 0.5
    return std * jax.random.normal(_next_key(), (o, i, kh, kw), jnp.float32)


def init_bn(c):
    return dict(
        gamma=1.0 + 0.1 * jax.random.normal(_next_key(), (c,), jnp.float32),
        beta=0.05 * jax.random.normal(_next_key(), (c,), jnp.float32),
        mean=0.05 * jax.random.normal(_next_key(), (c,), jnp.float32),
        var=1.0 + 0.1 * jnp.abs(jax.random.normal(_next_key(), (c,), jnp.float32)),
    )


def init_linear(n_in, n_out):
    std = (1.0 / n_in) ** 0.5
    w = std * jax.random.normal(_next_key(), (n_in, n_out), jnp.float32)
    b = 0.01 * jax.random.normal(_next_key(), (n_out,), jnp.float32)
    return w, b


def build_params(num_classes=10):
    params = {'conv1': init_conv(64, 3, 7, 7), 'bn1': init_bn(64)}
    inplanes = 64
    cfg = [('layer1', 64, 3, 1), ('layer2', 128, 4, 2),
           ('layer3', 256, 6, 2), ('layer4', 512, 3, 2)]
    for name, planes, nblocks, stride in cfg:
        blocks = []
        for s in [stride] + [1] * (nblocks - 1):
            p = {'stride': s,
                 'conv1': init_conv(planes, inplanes, 1, 1), 'bn1': init_bn(planes),
                 'conv2': init_conv(planes, planes, 3, 3), 'bn2': init_bn(planes),
                 'conv3': init_conv(planes * 4, planes, 1, 1), 'bn3': init_bn(planes * 4)}
            if s != 1 or inplanes != planes * 4:
                p['down_conv'] = init_conv(planes * 4, inplanes, 1, 1)
                p['down_bn'] = init_bn(planes * 4)
            blocks.append(p)
            inplanes = planes * 4
        params[name] = blocks
    params['fc1_w'], params['fc1_b'] = init_linear(2048, 2048)
    params['fc2_w'], params['fc2_b'] = init_linear(2048, num_classes)
    return params


# ----------------------------------------------------------------------------
# Small numerical self-check of the fused matmul kernel (bf16 tolerance)
# ----------------------------------------------------------------------------
def _self_check():
    k0 = jax.random.PRNGKey(1)
    a = jax.random.normal(k0, (48, 200), jnp.float32)
    w = jax.random.normal(jax.random.fold_in(k0, 1), (200, 96), jnp.float32)
    s = jax.random.normal(jax.random.fold_in(k0, 2), (96,), jnp.float32)
    b = jax.random.normal(jax.random.fold_in(k0, 3), (96,), jnp.float32)
    r = jax.random.normal(jax.random.fold_in(k0, 4), (48, 96), jnp.float32)
    pK, pN = _round_up(200, 128), _round_up(96, 128)
    wp = jnp.pad(w, ((0, pK - 200), (0, pN - 96))).astype(jnp.bfloat16)
    sp = jnp.pad(s, (0, pN - 96)).reshape(1, pN)
    bp = jnp.pad(b, (0, pN - 96)).reshape(1, pN)
    got = fused_matmul(a, wp, sp, bp, 96, residual=r, relu=True,
                       out_dtype=jnp.float32)
    a16 = a.astype(jnp.bfloat16).astype(jnp.float32)
    w16 = w.astype(jnp.bfloat16).astype(jnp.float32)
    r16 = r.astype(jnp.bfloat16).astype(jnp.float32)
    want = jnp.maximum((a16 @ w16) * s + b + r16, 0.0)
    assert jnp.allclose(got, want, rtol=5e-2, atol=5e-2), "matmul self-check failed"


if __name__ == "__main__":
    _self_check()
    raw = build_params(num_classes=10)
    params = prepare_params(raw)      # one-time: weights packed/padded/bf16, BN folded
    fwd = jax.jit(lambda x: hybrid_forward(x, params))
    x = jax.random.normal(jax.random.PRNGKey(0), (2, 3, 64, 64), jnp.float32)
    logits, reg_loss = fwd(x)
    logits = jax.block_until_ready(logits)
    assert logits.shape == (2, 10)
    assert float(reg_loss) == 0.0
    assert bool(jnp.all(jnp.isfinite(logits)))
    print("KERNEL_OK")
</pallas_src>

<mosaic_0001>
module attributes {stable_mosaic.version = 11 : i64} {
  func.func @_mm_kernel(%arg0: i32, %arg1: i32, %arg2: i32, %arg3: memref<48x256xbf16, #tpu.memory_space<vmem>>, %arg4: memref<256x128xbf16, #tpu.memory_space<vmem>>, %arg5: memref<1x128xf32, #tpu.memory_space<vmem>>, %arg6: memref<1x128xf32, #tpu.memory_space<vmem>>, %arg7: memref<48x128xbf16, #tpu.memory_space<vmem>>, %arg8: memref<48x128xf32, #tpu.memory_space<vmem>>, %arg9: memref<48x128xf32, #tpu.memory_space<vmem>>) attributes {dimension_semantics = [#tpu.dimension_semantics<parallel>, #tpu.dimension_semantics<parallel>, #tpu.dimension_semantics<arbitrary>], iteration_bounds = array<i64: 1, 1, 1>, scalar_prefetch = 0 : i64, scratch_operands = 1 : i64, tpu.core_type = #tpu.core_type<tc>, window_params = [{transform_indices = @transform_0, window_bounds = array<i64: 48, 256>}, {transform_indices = @transform_1, window_bounds = array<i64: 256, 128>}, {transform_indices = @transform_2, window_bounds = array<i64: 1, 128>}, {transform_indices = @transform_3, window_bounds = array<i64: 1, 128>}, {transform_indices = @transform_4, window_bounds = array<i64: 48, 128>}, {transform_indices = @transform_5, window_bounds = array<i64: 48, 128>}]} {
    %c0_i32 = arith.constant 0 : i32
    %0 = arith.cmpi eq, %arg2, %c0_i32 : i32
    %1 = arith.extui %0 : i1 to i32
    %c0_i32_0 = arith.constant 0 : i32
    %2 = arith.cmpi ne, %1, %c0_i32_0 : i32
    scf.if %2 {
      %cst_10 = arith.constant 0.000000e+00 : f32
      %12 = vector.broadcast %cst_10 : f32 to vector<48x128xf32>
      %c0_11 = arith.constant 0 : index
      %c0_12 = arith.constant 0 : index
      %13 = vector.load %arg9[%c0_11, %c0_12] : memref<48x128xf32, #tpu.memory_space<vmem>>, vector<48x128xf32>
      tpu.vector_store %arg9[%c0_11, %c0_12], %12 {strides = array<i32>} : memref<48x128xf32, #tpu.memory_space<vmem>>, vector<48x128xf32>,
    } else {
    }
    %c0 = arith.constant 0 : index
    %c0_1 = arith.constant 0 : index
    %3 = vector.load %arg9[%c0, %c0_1] : memref<48x128xf32, #tpu.memory_space<vmem>>, vector<48x128xf32>
    %c0_2 = arith.constant 0 : index
    %c0_3 = arith.constant 0 : index
    %4 = vector.load %arg3[%c0_2, %c0_3] : memref<48x256xbf16, #tpu.memory_space<vmem>>, vector<48x256xbf16>
    %c0_4 = arith.constant 0 : index
    %c0_5 = arith.constant 0 : index
    %5 = vector.load %arg4[%c0_4, %c0_5] : memref<256x128xbf16, #tpu.memory_space<vmem>>, vector<256x128xbf16>
    %cst = arith.constant dense<0.000000e+00> : vector<48x128xf32>
    %6 = tpu.matmul %4, %5, %cst {dimension_numbers = #tpu.dot_dimension_numbers<[1], [0], [0], [1], [0, 0, 1, 1], [], []>} : vector<48x256xbf16>, vector<256x128xbf16>, vector<48x128xf32> -> vector<48x128xf32>
    %7 = arith.addf %3, %6 : vector<48x128xf32>
    %c0_6 = arith.constant 0 : index
    %c0_7 = arith.constant 0 : index
    %8 = vector.load %arg9[%c0_6, %c0_7] : memref<48x128xf32, #tpu.memory_space<vmem>>, vector<48x128xf32>
    tpu.vector_store %arg9[%c0_6, %c0_7], %7 {strides = array<i32>} : memref<48x128xf32, #tpu.memory_space<vmem>>, vector<48x128xf32>,
    %c0_i32_8 = arith.constant 0 : i32
    %9 = arith.cmpi eq, %arg2, %c0_i32_8 : i32
    %10 = arith.extui %9 : i1 to i32
    %c0_i32_9 = arith.constant 0 : i32
    %11 = arith.cmpi ne, %10, %c0_i32_9 : i32
    scf.if %11 {
      %c0_10 = arith.constant 0 : index
      %c0_11 = arith.constant 0 : index
      %12 = vector.load %arg9[%c0_10, %c0_11] : memref<48x128xf32, #tpu.memory_space<vmem>>, vector<48x128xf32>
      %c0_12 = arith.constant 0 : index
      %c0_13 = arith.constant 0 : index
      %13 = vector.load %arg5[%c0_12, %c0_13] : memref<1x128xf32, #tpu.memory_space<vmem>>, vector<1x128xf32>
      %14 = vector.broadcast %13 : vector<1x128xf32> to vector<48x128xf32>
      %15 = arith.mulf %12, %14 : vector<48x128xf32>
      %c0_14 = arith.constant 0 : index
      %c0_15 = arith.constant 0 : index
      %16 = vector.load %arg6[%c0_14, %c0_15] : memref<1x128xf32, #tpu.memory_space<vmem>>, vector<1x128xf32>
      %17 = vector.broadcast %16 : vector<1x128xf32> to vector<48x128xf32>
      %18 = arith.addf %15, %17 : vector<48x128xf32>
      %c0_16 = arith.constant 0 : index
      %c0_17 = arith.constant 0 : index
      %19 = vector.load %arg7[%c0_16, %c0_17] : memref<48x128xbf16, #tpu.memory_space<vmem>>, vector<48x128xbf16>
      %20 = arith.extf %19 : vector<48x128xbf16> to vector<48x128xf32>
      %21 = arith.addf %18, %20 : vector<48x128xf32>
      %cst_18 = arith.constant 0.000000e+00 : f32
      %22 = vector.broadcast %cst_18 : f32 to vector<48x128xf32>
      %23 = arith.maximumf %21, %22 : vector<48x128xf32>
      %c0_19 = arith.constant 0 : index
      %c0_20 = arith.constant 0 : index
      %24 = vector.load %arg8[%c0_19, %c0_20] : memref<48x128xf32, #tpu.memory_space<vmem>>, vector<48x128xf32>
      tpu.vector_store %arg8[%c0_19, %c0_20], %23 {strides = array<i32>} : memref<48x128xf32, #tpu.memory_space<vmem>>, vector<48x128xf32>,
    } else {
    }
    return
  }
  func.func @transform_0(%arg0: i32, %arg1: i32, %arg2: i32) -> (i32, i32) {
    %c0_i32 = arith.constant 0 : i32
    return %arg0, %arg2 : i32, i32
  }
  func.func @transform_1(%arg0: i32, %arg1: i32, %arg2: i32) -> (i32, i32) {
    %c0_i32 = arith.constant 0 : i32
    return %arg2, %arg1 : i32, i32
  }
  func.func @transform_2(%arg0: i32, %arg1: i32, %arg2: i32) -> (i32, i32) {
    %c0_i32 = arith.constant 0 : i32
    %c0_i32_0 = arith.constant 0 : i32
    return %c0_i32, %arg1 : i32, i32
  }
  func.func @transform_3(%arg0: i32, %arg1: i32, %arg2: i32) -> (i32, i32) {
    %c0_i32 = arith.constant 0 : i32
    %c0_i32_0 = arith.constant 0 : i32
    return %c0_i32, %arg1 : i32, i32
  }
  func.func @transform_4(%arg0: i32, %arg1: i32, %arg2: i32) -> (i32, i32) {
    %c0_i32 = arith.constant 0 : i32
    return %arg0, %arg1 : i32, i32
  }
  func.func @transform_5(%arg0: i32, %arg1: i32, %arg2: i32) -> (i32, i32) {
    %c0_i32 = arith.constant 0 : i32
    return %arg0, %arg1 : i32, i32
  }
}

</mosaic_0001>

<llo_original>
// kernel: tpu_custom_call.1
$region0: #{tpu_custom_call.1}
  #allocation0 [shape = 'u32[]', space=smem, size = 0x4, offset = 0x4, fixed_abs, tag = 'smem constant byte address 0x4 - core index']
  #allocation1 [shape = 'u32[144,128]{1,0:T(1,128)}', space=vmem, size = 0x12000, scoped, tag = 'internal scratch']
  #allocation2 [shape = 'f32[48,128]{1,0:T(8,128)}', space=vmem, size = 0x6000, scoped, tag = 'scratch operand']
  %s0 = inlined_call_operand.hbm [shape: bf16[48,256], index: 0, kind: input, shape index: {}]
  %s1 = inlined_call_operand.hbm [shape: bf16[256,128], index: 1, kind: input, shape index: {}]
  %s2 = inlined_call_operand.vmem [shape: f32[1,128], index: 2, kind: input, shape index: {}]
  %s3 = inlined_call_operand.vmem [shape: f32[1,128], index: 3, kind: input, shape index: {}]
  %s4 = inlined_call_operand.hbm [shape: bf16[48,128], index: 4, kind: input, shape index: {}]
  %s5 = inlined_call_operand.hbm [shape: f32[48,128], index: 5, kind: output, shape index: {}]
  %s6 = sld [smem:[#allocation0]]
  $region50: #{tpu_custom_call.1} parent=0
    _
  %s8 = ssub.s32 1, %s6
  %s9 = scalar_select 0, %s8, %s6
  $region1: #{tpu_custom_call.1} parent=0
    #allocation3 [shape = 'u8[24576]{0}', space=vmem, size = 0x6000, scoped, tag = 'input window, operand 0, single buffered']
    #allocation4 [shape = 's32[1]{0}', space=sflag, size = 0x4, scoped, tag = 'scoped memory for tpu_custom_call.1']
    #allocation5 [shape = 's32[1]{0}', space=sflag, size = 0x4, scoped, tag = 'scoped memory for tpu_custom_call.1']
    #allocation6 [shape = 'u8[65536]{0}', space=vmem, size = 0x10000, scoped, tag = 'input window, operand 1, single buffered']
    #allocation7 [shape = 's32[1]{0}', space=sflag, size = 0x4, scoped, tag = 'scoped memory for tpu_custom_call.1']
    #allocation8 [shape = 'u8[12288]{0}', space=vmem, size = 0x3000, scoped, tag = 'input window, operand 4, single buffered']
    #allocation9 [shape = 'u8[24576]{0}', space=vmem, size = 0x6000, scoped, tag = 'output window, operand 0, single buffered']
    %10 = vsyncpa [#allocation4], 0
    %11 = vsyncpa [#allocation7], 0
    %12 = vsyncpa [#allocation5], 0
    // Predicated region
    $region2: #{tpu_custom_call.1} parent=1 // pred_check
      _
    $region3: #{tpu_custom_call.1} parent=1 // pred_check_branch
      %14 = sbr.rel (0) target = $region5
    $region4: #{tpu_custom_call.1} parent=1 // pred_region
      %s16 = ssub.s32 768, 768
      %17 = vsyncadd [#allocation4], %s16
      %s18 = sshll.u32 [#allocation3], 4
      %s19 = int_to_ptr.vmem [resolvable:$true] %s18
      %24 = dma.hbm_to_vmem [thread:$0]  %s0, 768, %s19, [#allocation4], 128, 128, 8
    $region5: #{tpu_custom_call.1} parent=1 // pred_fallthru
      _
    // Predicated region
    $region6: #{tpu_custom_call.1} parent=1 // pred_check
      _
    $region7: #{tpu_custom_call.1} parent=1 // pred_check_branch
      %26 = sbr.rel (0) target = $region9
    $region8: #{tpu_custom_call.1} parent=1 // pred_region
      %s28 = ssub.s32 2048, 2048
      %29 = vsyncadd [#allocation7], %s28
      %s30 = sshll.u32 [#allocation6], 4
      %s31 = int_to_ptr.vmem [resolvable:$true] %s30
      %36 = dma.hbm_to_vmem [thread:$0]  %s1, 2048, %s31, [#allocation7], 64, 64, 4
    $region9: #{tpu_custom_call.1} parent=1 // pred_fallthru
      _
    // Predicated region
    $region10: #{tpu_custom_call.1} parent=1 // pred_check
      _
    $region11: #{tpu_custom_call.1} parent=1 // pred_check_branch
      %38 = sbr.rel (0) target = $region13
    $region12: #{tpu_custom_call.1} parent=1 // pred_region
      _
    $region13: #{tpu_custom_call.1} parent=1 // pred_fallthru
      _
    // Predicated region
    $region14: #{tpu_custom_call.1} parent=1 // pred_check
      _
    $region15: #{tpu_custom_call.1} parent=1 // pred_check_branch
      %40 = sbr.rel (0) target = $region17
    $region16: #{tpu_custom_call.1} parent=1 // pred_region
      _
    $region17: #{tpu_custom_call.1} parent=1 // pred_fallthru
      _
    // Predicated region
    $region18: #{tpu_custom_call.1} parent=1 // pred_check
      _
    $region19: #{tpu_custom_call.1} parent=1 // pred_check_branch
      %42 = sbr.rel (0) target = $region21
    $region20: #{tpu_custom_call.1} parent=1 // pred_region
      %s44 = ssub.s32 384, 384
      %45 = vsyncadd [#allocation7], %s44
      %s46 = sshll.u32 [#allocation8], 4
      %s47 = int_to_ptr.vmem [resolvable:$true] %s46
      %52 = dma.hbm_to_vmem [thread:$0]  %s4, 384, %s47, [#allocation7], 64, 64, 4
    $region21: #{tpu_custom_call.1} parent=1 // pred_fallthru
      _
    // Predicated region
    $region22: #{tpu_custom_call.1} parent=1 // pred_check
      _
    $region23: #{tpu_custom_call.1} parent=1 // pred_check_branch
      %54 = sbr.rel (0) target = $region25
    $region24: #{tpu_custom_call.1} parent=1 // pred_region
      %55 = dma.done [#allocation4], 768
    $region25: #{tpu_custom_call.1} parent=1 // pred_fallthru
      _
    // Predicated region
    $region26: #{tpu_custom_call.1} parent=1 // pred_check
      _
    $region27: #{tpu_custom_call.1} parent=1 // pred_check_branch
      %57 = sbr.rel (0) target = $region29
    $region28: #{tpu_custom_call.1} parent=1 // pred_region
      %58 = dma.done [#allocation7], 2048
    $region29: #{tpu_custom_call.1} parent=1 // pred_fallthru
      _
    // Predicated region
    $region30: #{tpu_custom_call.1} parent=1 // pred_check
      _
    $region31: #{tpu_custom_call.1} parent=1 // pred_check_branch
      %60 = sbr.rel (0) target = $region33
    $region32: #{tpu_custom_call.1} parent=1 // pred_region
      %61 = dma.done [#allocation7], 384
    $region33: #{tpu_custom_call.1} parent=1 // pred_fallthru
      _
    %p63 = scmp.eq.s32.totalorder 0, 0
    // Predicated region
    $region34: #{tpu_custom_call.1} parent=1 // pred_check
      %p64 = pneg %p63
    $region35: #{tpu_custom_call.1} parent=1 // pred_check_branch
      %66 = sbr.rel (%p64) target = $region37
    $region36: #{tpu_custom_call.1} parent=1 // pred_region
      %67 = vst [vmem:[#allocation2] sm:$0xff] 0.0
      %68 = vst [vmem:[#allocation2 + $0x8] sm:$0xff] 0.0
      %69 = vst [vmem:[#allocation2 + $0x10] sm:$0xff] 0.0
      %70 = vst [vmem:[#allocation2 + $0x18] sm:$0xff] 0.0
      %71 = vst [vmem:[#allocation2 + $0x20] sm:$0xff] 0.0
      %72 = vst [vmem:[#allocation2 + $0x28] sm:$0xff] 0.0
    $region37: #{tpu_custom_call.1} parent=1 // pred_fallthru
      _
    %v73 = vld [vmem:[#allocation2] sm:$0xff]
    %v74 = vld [vmem:[#allocation2 + $0x8] sm:$0xff]
    %v75 = vld [vmem:[#allocation2 + $0x10] sm:$0xff]
    %v76 = vld [vmem:[#allocation2 + $0x18] sm:$0xff]
    %v77 = vld [vmem:[#allocation2 + $0x20] sm:$0xff]
    %v78 = vld [vmem:[#allocation2 + $0x28] sm:$0xff]
    %v79 = vld [vmem:[#allocation3] sm:$0xff]
    %v80 = vld [vmem:[#allocation3 + $0x8] sm:$0xff]
    %v81 = vld [vmem:[#allocation3 + $0x10] sm:$0xff]
    %v82 = vld [vmem:[#allocation3 + $0x18] sm:$0xff]
    %v83 = vld [vmem:[#allocation3 + $0x20] sm:$0xff]
    %v84 = vld [vmem:[#allocation3 + $0x28] sm:$0xff]
    %v85 = vld [vmem:[#allocation6] sm:$0xf]
    %v86 = vld [vmem:[#allocation6 + $0x4] sm:$0xf]
    %v87 = vld [vmem:[#allocation6 + $0x8] sm:$0xf]
    %v88 = vld [vmem:[#allocation6 + $0xc] sm:$0xf]
    %v89 = vld [vmem:[#allocation6 + $0x10] sm:$0xf]
    %v90 = vld [vmem:[#allocation6 + $0x14] sm:$0xf]
    %v91 = vld [vmem:[#allocation6 + $0x18] sm:$0xf]
    %v92 = vld [vmem:[#allocation6 + $0x1c] sm:$0xf]
    %v93 = vld [vmem:[#allocation6 + $0x20] sm:$0xf]
    %v94 = vld [vmem:[#allocation6 + $0x24] sm:$0xf]
    %v95 = vld [vmem:[#allocation6 + $0x28] sm:$0xf]
    %v96 = vld [vmem:[#allocation6 + $0x2c] sm:$0xf]
    %v97 = vld [vmem:[#allocation6 + $0x30] sm:$0xf]
    %v98 = vld [vmem:[#allocation6 + $0x34] sm:$0xf]
    %v99 = vld [vmem:[#allocation6 + $0x38] sm:$0xf]
    %v100 = vld [vmem:[#allocation6 + $0x3c] sm:$0xf]
    %v101 = vld [vmem:[#allocation6 + $0x40] sm:$0xf]
    %v102 = vld [vmem:[#allocation6 + $0x44] sm:$0xf]
    %v103 = vld [vmem:[#allocation6 + $0x48] sm:$0xf]
    %v104 = vld [vmem:[#allocation6 + $0x4c] sm:$0xf]
    %v105 = vld [vmem:[#allocation6 + $0x50] sm:$0xf]
    %v106 = vld [vmem:[#allocation6 + $0x54] sm:$0xf]
    %v107 = vld [vmem:[#allocation6 + $0x58] sm:$0xf]
    %v108 = vld [vmem:[#allocation6 + $0x5c] sm:$0xf]
    %v109 = vld [vmem:[#allocation6 + $0x60] sm:$0xf]
    %v110 = vld [vmem:[#allocation6 + $0x64] sm:$0xf]
    %v111 = vld [vmem:[#allocation6 + $0x68] sm:$0xf]
    %v112 = vld [vmem:[#allocation6 + $0x6c] sm:$0xf]
    %v113 = vld [vmem:[#allocation6 + $0x70] sm:$0xf]
    %v114 = vld [vmem:[#allocation6 + $0x74] sm:$0xf]
    %v115 = vld [vmem:[#allocation6 + $0x78] sm:$0xf]
    %v116 = vld [vmem:[#allocation6 + $0x7c] sm:$0xf]
    %v123 = vunpack.c.l.b16 %v79
    %v124 = vunpack.c.h.b16 %v79
    %v125 = vunpack.c.l.b16 %v80
    %v126 = vunpack.c.h.b16 %v80
    %v127 = vunpack.c.l.b16 %v81
    %v128 = vunpack.c.h.b16 %v81
    %v129 = vunpack.c.l.b16 %v82
    %v130 = vunpack.c.h.b16 %v82
    %v131 = vunpack.c.l.b16 %v83
    %v132 = vunpack.c.h.b16 %v83
    %v133 = vunpack.c.l.b16 %v84
    %v134 = vunpack.c.h.b16 %v84
    %v135 = vpack.c.b16 %v125, %v123
    %v136 = vpack.c.b16 %v126, %v124
    %v137 = vpack.c.b16 %v129, %v127
    %v138 = vpack.c.b16 %v130, %v128
    %v139 = vpack.c.b16 %v133, %v131
    %v140 = vpack.c.b16 %v134, %v132
    %v179 = vunpack.c.l.b16 %v85
    %v180 = vunpack.c.l.b16 %v86
    %v181 = vunpack.c.l.b16 %v87
    %v182 = vunpack.c.l.b16 %v88
    %v183 = vunpack.c.l.b16 %v89
    %v184 = vunpack.c.l.b16 %v90
    %v185 = vunpack.c.l.b16 %v91
    %v186 = vunpack.c.l.b16 %v92
    %v187 = vunpack.c.l.b16 %v93
    %v188 = vunpack.c.l.b16 %v94
    %v189 = vunpack.c.l.b16 %v95
    %v190 = vunpack.c.l.b16 %v96
    %v191 = vunpack.c.l.b16 %v97
    %v192 = vunpack.c.l.b16 %v98
    %v193 = vunpack.c.l.b16 %v99
    %v194 = vunpack.c.l.b16 %v100
    %v195 = vunpack.c.l.b16 %v101
    %v196 = vunpack.c.l.b16 %v102
    %v197 = vunpack.c.l.b16 %v103
    %v198 = vunpack.c.l.b16 %v104
    %v199 = vunpack.c.l.b16 %v105
    %v200 = vunpack.c.l.b16 %v106
    %v201 = vunpack.c.l.b16 %v107
    %v202 = vunpack.c.l.b16 %v108
    %v203 = vunpack.c.l.b16 %v109
    %v204 = vunpack.c.l.b16 %v110
    %v205 = vunpack.c.l.b16 %v111
    %v206 = vunpack.c.l.b16 %v112
    %v207 = vunpack.c.l.b16 %v113
    %v208 = vunpack.c.l.b16 %v114
    %v209 = vunpack.c.l.b16 %v115
    %v210 = vunpack.c.l.b16 %v116
    %v211 = vpack.c.b16 %v180, %v179
    %v212 = vpack.c.b16 %v182, %v181
    %v213 = vpack.c.b16 %v184, %v183
    %v214 = vpack.c.b16 %v186, %v185
    %v215 = vpack.c.b16 %v188, %v187
    %v216 = vpack.c.b16 %v190, %v189
    %v217 = vpack.c.b16 %v192, %v191
    %v218 = vpack.c.b16 %v194, %v193
    %v219 = vpack.c.b16 %v196, %v195
    %v220 = vpack.c.b16 %v198, %v197
    %v221 = vpack.c.b16 %v200, %v199
    %v222 = vpack.c.b16 %v202, %v201
    %v223 = vpack.c.b16 %v204, %v203
    %v224 = vpack.c.b16 %v206, %v205
    %v225 = vpack.c.b16 %v208, %v207
    %v226 = vpack.c.b16 %v210, %v209
    %243 = vmatprep.subr.bf16.mxu0 0
    %244 = vmatpush1.bf16.msra.mxu0 %v211
    %245 = vmatprep.subr.bf16.mxu0 0
    %246 = vmatpush1.bf16.msra.mxu0 %v212
    %247 = vmatprep.subr.bf16.mxu0 0
    %248 = vmatpush1.bf16.msra.mxu0 %v213
    %249 = vmatprep.subr.bf16.mxu0 0
    %250 = vmatpush1.bf16.msra.mxu0 %v214
    %251 = vmatprep.subr.bf16.mxu0 0
    %252 = vmatpush1.bf16.msra.mxu0 %v215
    %253 = vmatprep.subr.bf16.mxu0 0
    %254 = vmatpush1.bf16.msra.mxu0 %v216
    %255 = vmatprep.subr.bf16.mxu0 0
    %256 = vmatpush1.bf16.msra.mxu0 %v217
    %257 = vmatprep.subr.bf16.mxu0 0
    %258 = vmatpush1.bf16.msra.mxu0 %v218
    %259 = vmatprep.subr.bf16.mxu0 0
    %260 = vmatpush1.bf16.msra.mxu0 %v219
    %261 = vmatprep.subr.bf16.mxu0 0
    %262 = vmatpush1.bf16.msra.mxu0 %v220
    %263 = vmatprep.subr.bf16.mxu0 0
    %264 = vmatpush1.bf16.msra.mxu0 %v221
    %265 = vmatprep.subr.bf16.mxu0 0
    %266 = vmatpush1.bf16.msra.mxu0 %v222
    %267 = vmatprep.subr.bf16.mxu0 0
    %268 = vmatpush1.bf16.msra.mxu0 %v223
    %269 = vmatprep.subr.bf16.mxu0 0
    %270 = vmatpush1.bf16.msra.mxu0 %v224
    %271 = vmatprep.subr.bf16.mxu0 0
    %272 = vmatpush1.bf16.msra.mxu0 %v225
    %273 = vmatprep.subr.bf16.mxu0 0
    %274 = vmatpush1.bf16.msra.mxu0 %v226
    %275 = vmatprep.mubr.bf16.mxu0 %v136
    %276 = vmatmul.mubr.bf16.gmra.mrb[0].mxu0 %v135
    %v277 = vpop.f32.mrb[0].mxu0
    %v278 = vadd.f32 0.0, %v277
    %v279 = vpop.f32.mrb[0].mxu0
    %v280 = vpop.f32.mrb[0].mxu0
    %v281 = vadd.f32 0.0, %v280
    %v282 = vpop.f32.mrb[0].mxu0
    %283 = vmatprep.mubr.bf16.mxu0 %v138
    %284 = vmatmul.mubr.bf16.gmra.mrb[0].mxu0 %v137
    %v285 = vpop.f32.mrb[0].mxu0
    %v286 = vadd.f32 0.0, %v285
    %v287 = vpop.f32.mrb[0].mxu0
    %v288 = vpop.f32.mrb[0].mxu0
    %v289 = vadd.f32 0.0, %v288
    %v290 = vpop.f32.mrb[0].mxu0
    %291 = vmatprep.mubr.bf16.mxu0 %v140
    %292 = vmatmul.mubr.bf16.gmra.mrb[0].mxu0 %v139
    %v293 = vpop.f32.mrb[0].mxu0
    %v294 = vadd.f32 0.0, %v293
    %v295 = vpop.f32.mrb[0].mxu0
    %v296 = vpop.f32.mrb[0].mxu0
    %v297 = vadd.f32 0.0, %v296
    %v298 = vpop.f32.mrb[0].mxu0
    %299 = vdwg.mxu0
    %v300 = vadd.f32 %v73, %v278
    %v301 = vadd.f32 %v74, %v281
    %v302 = vadd.f32 %v75, %v286
    %v303 = vadd.f32 %v76, %v289
    %v304 = vadd.f32 %v77, %v294
    %v305 = vadd.f32 %v78, %v297
    %306 = vst [vmem:[#allocation2] sm:$0xff] %v300
    %307 = vst [vmem:[#allocation2 + $0x8] sm:$0xff] %v301
    %308 = vst [vmem:[#allocation2 + $0x10] sm:$0xff] %v302
    %309 = vst [vmem:[#allocation2 + $0x18] sm:$0xff] %v303
    %310 = vst [vmem:[#allocation2 + $0x20] sm:$0xff] %v304
    %311 = vst [vmem:[#allocation2 + $0x28] sm:$0xff] %v305
    // Predicated region
    $region38: #{tpu_custom_call.1} parent=1 // pred_check
      %p312 = pneg %p63
    $region39: #{tpu_custom_call.1} parent=1 // pred_check_branch
      %314 = sbr.rel (%p312) target = $region41
    $region40: #{tpu_custom_call.1} parent=1 // pred_region
      %v315 = vld [vmem:[#allocation2] sm:$0xff]
      %v316 = vld [vmem:[#allocation2 + $0x8] sm:$0xff]
      %v317 = vld [vmem:[#allocation2 + $0x10] sm:$0xff]
      %v318 = vld [vmem:[#allocation2 + $0x18] sm:$0xff]
      %v319 = vld [vmem:[#allocation2 + $0x20] sm:$0xff]
      %v320 = vld [vmem:[#allocation2 + $0x28] sm:$0xff]
      %v321 = vld [vmem:[%s2] sm:$0x1]
      %v323 = vlaneseq
      %v324 = vshrl.u32 %v323, 7
      %v325 = vsub.s32 0, %v324
      %v326 = vrot.slane %v321, %v325
      %v328 = vmul.f32 %v315, %v326
      %v329 = vmul.f32 %v316, %v326
      %v330 = vmul.f32 %v317, %v326
      %v331 = vmul.f32 %v318, %v326
      %v332 = vmul.f32 %v319, %v326
      %v333 = vmul.f32 %v320, %v326
      %v334 = vld [vmem:[%s3] sm:$0x1]
      %v336 = vlaneseq
      %v337 = vshrl.u32 %v336, 7
      %v338 = vsub.s32 0, %v337
      %v339 = vrot.slane %v334, %v338
      %v341 = vadd.f32 %v328, %v339
      %v342 = vadd.f32 %v329, %v339
      %v343 = vadd.f32 %v330, %v339
      %v344 = vadd.f32 %v331, %v339
      %v345 = vadd.f32 %v332, %v339
      %v346 = vadd.f32 %v333, %v339
      %v347 = vld [vmem:[#allocation8] sm:$0xf]
      %v348 = vld [vmem:[#allocation8 + $0x4] sm:$0xf]
      %v349 = vld [vmem:[#allocation8 + $0x8] sm:$0xf]
      %v350 = vld [vmem:[#allocation8 + $0xc] sm:$0xf]
      %v351 = vld [vmem:[#allocation8 + $0x10] sm:$0xf]
      %v352 = vld [vmem:[#allocation8 + $0x14] sm:$0xf]
      %v353 = vunpack.c.l.bf16 %v347
      %v354 = vunpack.c.l.bf16 %v348
      %v355 = vunpack.c.l.bf16 %v349
      %v356 = vunpack.c.l.bf16 %v350
      %v357 = vunpack.c.l.bf16 %v351
      %v358 = vunpack.c.l.bf16 %v352
      %v359 = vadd.f32 %v341, %v353
      %v360 = vadd.f32 %v342, %v354
      %v361 = vadd.f32 %v343, %v355
      %v362 = vadd.f32 %v344, %v356
      %v363 = vadd.f32 %v345, %v357
      %v364 = vadd.f32 %v346, %v358
      %v365 = vmax.f32 %v359, 0.0
      %v366 = vmax.f32 %v360, 0.0
      %v367 = vmax.f32 %v361, 0.0
      %v368 = vmax.f32 %v362, 0.0
      %v369 = vmax.f32 %v363, 0.0
      %v370 = vmax.f32 %v364, 0.0
      %371 = vst [vmem:[#allocation9] sm:$0xff] %v365
      %372 = vst [vmem:[#allocation9 + $0x8] sm:$0xff] %v366
      %373 = vst [vmem:[#allocation9 + $0x10] sm:$0xff] %v367
      %374 = vst [vmem:[#allocation9 + $0x18] sm:$0xff] %v368
      %375 = vst [vmem:[#allocation9 + $0x20] sm:$0xff] %v369
      %376 = vst [vmem:[#allocation9 + $0x28] sm:$0xff] %v370
    $region41: #{tpu_custom_call.1} parent=1 // pred_fallthru
      _
    // Predicated region
    $region42: #{tpu_custom_call.1} parent=1 // pred_check
      _
    $region43: #{tpu_custom_call.1} parent=1 // pred_check_branch
      %378 = sbr.rel (0) target = $region45
    $region44: #{tpu_custom_call.1} parent=1 // pred_region
      %s380 = ssub.s32 768, 768
      %381 = vsyncadd [#allocation5], %s380
      %s382 = sshll.u32 [#allocation9], 4
      %s383 = int_to_ptr.vmem [resolvable:$true] %s382
      %388 = dma.vmem_to_hbm [thread:$0]  %s383, 768, %s5, [#allocation5], 128, 128, 8
    $region45: #{tpu_custom_call.1} parent=1 // pred_fallthru
      _
    // Predicated region
    $region46: #{tpu_custom_call.1} parent=1 // pred_check
      _
    $region47: #{tpu_custom_call.1} parent=1 // pred_check_branch
      %390 = sbr.rel (0) target = $region49
    $region48: #{tpu_custom_call.1} parent=1 // pred_region
      %391 = dma.done [#allocation5], 768
    $region49: #{tpu_custom_call.1} parent=1 // pred_fallthru
      _
    %392 = vsyncpa [#allocation4], 1
    %393 = vsyncpa [#allocation7], 1
    %394 = vsyncpa [#allocation5], 1

</llo_original>
